<compile_context>
chip_gen: v5e
topology: v5e:2x2
jax: 0.10.0
libtpu: 0.0.40
codegen_flags: <defaults>
</compile_context>

<pallas_src>
import jax
import jax.numpy as jnp
from jax.experimental import pallas as pl
from jax.experimental.pallas import tpu as pltpu

# Gaussian taps (== torch.Tensor([[0.05, 0.25, 0.4, 0.25, 0.05]]))
K1 = (0.05, 0.25, 0.4, 0.25, 0.05)
K1_X2 = tuple(2.0 * v for v in K1)   # second conv: folds `down * 4` (2x per 1-D pass)
EPS = 1e-3                           # CharbonnierLoss eps


def _edge_loss_kernel(x_ref, y_ref, out_ref):
    bsz, h, w = x_ref.shape
    # NOTE: replicate padding via roll+fixup assumes h, w >= 3 (shifts up to 2).

    # ---- hoisted index masks: built once per grid step, shared by every conv
    # pass and broadcast over the batch dim ----
    r_idx = jax.lax.broadcasted_iota(jnp.int32, (h, w), 0)
    c_idx = jax.lax.broadcasted_iota(jnp.int32, (h, w), 1)
    even_mask = ((r_idx % 2) == 0) & ((c_idx % 2) == 0)
    # boundary masks per shift magnitude (k = 1, 2)
    w_hi = (c_idx >= w - 1, c_idx >= w - 2)   # lanes, +k shifts
    w_lo = (c_idx < 1, c_idx < 2)             # lanes, -k shifts
    h_hi = (r_idx >= h - 1, r_idx >= h - 2)   # sublanes, +k shifts
    h_lo = (r_idx < 1, r_idx < 2)             # sublanes, -k shifts

    def conv1d(a, taps, axis, hi_masks, lo_masks):
        """5-tap 1-D conv along `axis` of (bsz, h, w) with replicate boundary."""
        n = a.shape[axis]
        # edge row/column hoisted once per pass (shared by both shift magnitudes)
        if axis == 2:
            first, last = a[:, :, 0:1], a[:, :, n - 1:n]
        else:
            first, last = a[:, 0:1, :], a[:, n - 1:n, :]
        out = taps[2] * a
        for k in (1, 2):
            # s_plus[i]  = a[clamp(i + k, 0, n-1)]
            sp = jnp.where(hi_masks[k - 1], last,
                           pltpu.roll(a, shift=(-k) % n, axis=axis))
            # s_minus[i] = a[clamp(i - k, 0, n-1)]
            sm = jnp.where(lo_masks[k - 1], first,
                           pltpu.roll(a, shift=k, axis=axis))
            out = out + taps[2 + k] * sp + taps[2 - k] * sm
        return out

    def gauss(a, taps):
        """Separable 5x5 gaussian, replicate padding: lanes pass then sublanes."""
        a = conv1d(a, taps, axis=2, hi_masks=w_hi, lo_masks=w_lo)
        a = conv1d(a, taps, axis=1, hi_masks=h_hi, lo_masks=h_lo)
        return a

    # Linearity: lap(x) - lap(y) == lap(x - y) -> one Laplacian for the block.
    d = x_ref[...].astype(jnp.float32) - y_ref[...].astype(jnp.float32)
    g = gauss(d, K1)
    g = jnp.where(even_mask, g, 0.0)   # new_filter[::2, ::2] = down (x4 folded below)
    g = gauss(g, K1_X2)                # 2x per 1-D pass == x4 overall
    lap = d - g

    # Single elementwise Charbonnier + one reduce for the whole block.
    total = jnp.sum(jnp.sqrt(lap * lap + jnp.float32(EPS * EPS)))

    # Per-block partial sum in this step's own lane-dense tile; no cross-step
    # resident accumulator -> the grid axis stays "parallel".
    out_ref[...] = jnp.full(out_ref.shape, total, jnp.float32)


def _pick_block(nc, h, w, itemsize):
    """Largest divisor of nc that fits the VMEM budget and keeps >= 2 grid steps."""
    slice_f32 = h * w * 4          # conv intermediates are f32
    slice_in = h * w * itemsize    # inputs stay in native dtype in HBM/VMEM
    # ~8 live f32 (bsz,h,w) intermediates + 2 inputs x 2 pipeline buffers,
    # sized for the tight v7x scoped-VMEM budget (<= 32 MiB).
    cap_f32 = (12 * 1024 * 1024) // max(1, 8 * slice_f32)
    cap_in = (8 * 1024 * 1024) // max(1, 4 * slice_in)
    cap = max(1, min(nc, 64, cap_f32, cap_in))
    if nc >= 2:
        cap = max(1, min(cap, nc // 2))   # num_blocks >= 2: use both v7x TCs
    for b in range(cap, 0, -1):
        if nc % b == 0:
            return b
    return 1


@jax.jit
def edge_loss(x, y):
    """EdgeLoss.forward(x, y); x, y are NCHW arrays (the module implies C == 3)."""
    n, c, h, w = x.shape
    nc = n * c
    xs = x.reshape(nc, h, w)               # keep native dtype (bf16 stays bf16)
    ys = y.reshape(nc, h, w)

    bsz = _pick_block(nc, h, w, x.dtype.itemsize)
    num_blocks = nc // bsz
    # TODO(synk): for very large H, W add spatial row tiling with a 4-row halo
    # (global row indices for even_mask / edge fixups) instead of one full
    # (H, W) image per slice.
    # TODO(synk): for narrow images (W < 128) pack multiple rows/slices into
    # the lane dim (or transpose H<->W) to fill the [8,128] vregs.

    partials = pl.pallas_call(
        _edge_loss_kernel,
        out_shape=jax.ShapeDtypeStruct((num_blocks, 8, 128), jnp.float32),
        grid=(num_blocks,),
        in_specs=[
            pl.BlockSpec((bsz, h, w), lambda i: (i, 0, 0)),
            pl.BlockSpec((bsz, h, w), lambda i: (i, 0, 0)),
        ],
        out_specs=pl.BlockSpec((1, 8, 128), lambda i: (i, 0, 0)),
        compiler_params=pltpu.CompilerParams(
            dimension_semantics=("parallel",),
            vmem_limit_bytes=32 * 1024 * 1024,
        ),
    )(xs, ys)

    total = jnp.sum(partials[:, 0, 0])
    return total / (nc * h * w)


# ---------------- pure-JAX reference (sanity check only) ----------------
def _ref_conv_gauss(img):  # img: (N, C, H, W)
    k1 = jnp.asarray(K1, jnp.float32)
    k2 = jnp.outer(k1, k1)
    n, c, h, w = img.shape
    p = jnp.pad(img, ((0, 0), (0, 0), (2, 2), (2, 2)), mode="edge")
    out = jnp.zeros_like(img)
    for di in range(5):
        for dj in range(5):
            out = out + k2[di, dj] * p[:, :, di:di + h, dj:dj + w]
    return out


def _ref_laplacian(img):
    filtered = _ref_conv_gauss(img)
    new_filter = jnp.zeros_like(filtered)
    new_filter = new_filter.at[:, :, ::2, ::2].set(filtered[:, :, ::2, ::2] * 4.0)
    filtered2 = _ref_conv_gauss(new_filter)
    return img - filtered2


def _ref_edge_loss(x, y):
    diff = _ref_laplacian(x) - _ref_laplacian(y)
    return jnp.mean(jnp.sqrt(diff * diff + EPS * EPS))


if __name__ == "__main__":
    key = jax.random.PRNGKey(0)
    kx, ky = jax.random.split(key)
    # EdgeLoss hard-codes a 3-channel depthwise gaussian kernel -> C must be 3.
    x = jax.random.normal(kx, (2, 3, 16, 16), jnp.float32)
    y = jax.random.normal(ky, (2, 3, 16, 16), jnp.float32)

    loss = jax.block_until_ready(edge_loss(x, y))
    ref = jax.block_until_ready(_ref_edge_loss(x, y))

    assert jnp.allclose(loss, ref, rtol=1e-4, atol=1e-5), (loss, ref)
    print("KERNEL_OK")
</pallas_src>

<mosaic_0001>
module attributes {stable_mosaic.version = 11 : i64} {
  func.func @_edge_loss_kernel(%arg0: i32, %arg1: memref<3x16x16xf32, #tpu.memory_space<vmem>>, %arg2: memref<3x16x16xf32, #tpu.memory_space<vmem>>, %arg3: memref<1x8x128xf32, #tpu.memory_space<vmem>>) attributes {dimension_semantics = [#tpu.dimension_semantics<parallel>], iteration_bounds = array<i64: 2>, scalar_prefetch = 0 : i64, scratch_operands = 0 : i64, tpu.core_type = #tpu.core_type<tc>, window_params = [{transform_indices = @transform_0, window_bounds = array<i64: 3, 16, 16>}, {transform_indices = @transform_1, window_bounds = array<i64: 3, 16, 16>}, {transform_indices = @transform_2, window_bounds = array<i64: 1, 8, 128>}]} {
    %0 = tpu.iota {dimensions = array<i32: 0>} : vector<16x16xi32>
    %1 = tpu.iota {dimensions = array<i32: 1>} : vector<16x16xi32>
    %c2_i32 = arith.constant 2 : i32
    %c0_i32 = arith.constant 0 : i32
    %2 = arith.cmpi eq, %c2_i32, %c0_i32 : i32
    %c1_i32 = arith.constant 1 : i32
    %3 = arith.select %2, %c1_i32, %c2_i32 : i32
    %4 = vector.broadcast %3 : i32 to vector<16x16xi32>
    %5 = arith.remsi %0, %4 : vector<16x16xi32>
    %c0_i32_0 = arith.constant 0 : i32
    %6 = vector.broadcast %c0_i32_0 : i32 to vector<16x16xi32>
    %7 = arith.cmpi ne, %5, %6 : vector<16x16xi32>
    %c0_i32_1 = arith.constant 0 : i32
    %8 = vector.broadcast %c0_i32_1 : i32 to vector<16x16xi32>
    %9 = arith.cmpi slt, %5, %8 : vector<16x16xi32>
    %c0_i32_2 = arith.constant 0 : i32
    %10 = arith.cmpi slt, %3, %c0_i32_2 : i32
    %11 = vector.broadcast %10 : i1 to vector<16x16xi1>
    %12 = vector.broadcast %11 : vector<16x16xi1> to vector<16x16xi1>
    %13 = arith.xori %9, %12 : vector<16x16xi1>
    %14 = arith.andi %13, %7 : vector<16x16xi1>
    %15 = vector.broadcast %3 : i32 to vector<16x16xi32>
    %16 = arith.addi %5, %15 : vector<16x16xi32>
    %17 = arith.select %14, %16, %5 : vector<16x16xi1>, vector<16x16xi32>
    %c0_i32_3 = arith.constant 0 : i32
    %18 = vector.broadcast %c0_i32_3 : i32 to vector<16x16xi32>
    %19 = arith.cmpi eq, %17, %18 : vector<16x16xi32>
    %c2_i32_4 = arith.constant 2 : i32
    %c0_i32_5 = arith.constant 0 : i32
    %20 = arith.cmpi eq, %c2_i32_4, %c0_i32_5 : i32
    %c1_i32_6 = arith.constant 1 : i32
    %21 = arith.select %20, %c1_i32_6, %c2_i32_4 : i32
    %22 = vector.broadcast %21 : i32 to vector<16x16xi32>
    %23 = arith.remsi %1, %22 : vector<16x16xi32>
    %c0_i32_7 = arith.constant 0 : i32
    %24 = vector.broadcast %c0_i32_7 : i32 to vector<16x16xi32>
    %25 = arith.cmpi ne, %23, %24 : vector<16x16xi32>
    %c0_i32_8 = arith.constant 0 : i32
    %26 = vector.broadcast %c0_i32_8 : i32 to vector<16x16xi32>
    %27 = arith.cmpi slt, %23, %26 : vector<16x16xi32>
    %c0_i32_9 = arith.constant 0 : i32
    %28 = arith.cmpi slt, %21, %c0_i32_9 : i32
    %29 = vector.broadcast %28 : i1 to vector<16x16xi1>
    %30 = vector.broadcast %29 : vector<16x16xi1> to vector<16x16xi1>
    %31 = arith.xori %27, %30 : vector<16x16xi1>
    %32 = arith.andi %31, %25 : vector<16x16xi1>
    %33 = vector.broadcast %21 : i32 to vector<16x16xi32>
    %34 = arith.addi %23, %33 : vector<16x16xi32>
    %35 = arith.select %32, %34, %23 : vector<16x16xi1>, vector<16x16xi32>
    %c0_i32_10 = arith.constant 0 : i32
    %36 = vector.broadcast %c0_i32_10 : i32 to vector<16x16xi32>
    %37 = arith.cmpi eq, %35, %36 : vector<16x16xi32>
    %38 = arith.andi %19, %37 : vector<16x16xi1>
    %c15_i32 = arith.constant 15 : i32
    %39 = vector.broadcast %c15_i32 : i32 to vector<16x16xi32>
    %40 = arith.cmpi sge, %1, %39 : vector<16x16xi32>
    %c14_i32 = arith.constant 14 : i32
    %41 = vector.broadcast %c14_i32 : i32 to vector<16x16xi32>
    %42 = arith.cmpi sge, %1, %41 : vector<16x16xi32>
    %c1_i32_11 = arith.constant 1 : i32
    %43 = vector.broadcast %c1_i32_11 : i32 to vector<16x16xi32>
    %44 = arith.cmpi slt, %1, %43 : vector<16x16xi32>
    %c2_i32_12 = arith.constant 2 : i32
    %45 = vector.broadcast %c2_i32_12 : i32 to vector<16x16xi32>
    %46 = arith.cmpi slt, %1, %45 : vector<16x16xi32>
    %c15_i32_13 = arith.constant 15 : i32
    %47 = vector.broadcast %c15_i32_13 : i32 to vector<16x16xi32>
    %48 = arith.cmpi sge, %0, %47 : vector<16x16xi32>
    %c14_i32_14 = arith.constant 14 : i32
    %49 = vector.broadcast %c14_i32_14 : i32 to vector<16x16xi32>
    %50 = arith.cmpi sge, %0, %49 : vector<16x16xi32>
    %c1_i32_15 = arith.constant 1 : i32
    %51 = vector.broadcast %c1_i32_15 : i32 to vector<16x16xi32>
    %52 = arith.cmpi slt, %0, %51 : vector<16x16xi32>
    %c2_i32_16 = arith.constant 2 : i32
    %53 = vector.broadcast %c2_i32_16 : i32 to vector<16x16xi32>
    %54 = arith.cmpi slt, %0, %53 : vector<16x16xi32>
    %c0 = arith.constant 0 : index
    %c0_17 = arith.constant 0 : index
    %c0_18 = arith.constant 0 : index
    %55 = vector.load %arg1[%c0, %c0_17, %c0_18] : memref<3x16x16xf32, #tpu.memory_space<vmem>>, vector<3x16x16xf32>
    %c0_19 = arith.constant 0 : index
    %c0_20 = arith.constant 0 : index
    %c0_21 = arith.constant 0 : index
    %56 = vector.load %arg2[%c0_19, %c0_20, %c0_21] : memref<3x16x16xf32, #tpu.memory_space<vmem>>, vector<3x16x16xf32>
    %57 = arith.subf %55, %56 : vector<3x16x16xf32>
    %58 = vector.extract_strided_slice %57 {offsets = [0, 0, 0], sizes = [3, 16, 1], strides = [1, 1, 1]} : vector<3x16x16xf32> to vector<3x16x1xf32>
    %59 = vector.extract_strided_slice %57 {offsets = [0, 0, 15], sizes = [3, 16, 1], strides = [1, 1, 1]} : vector<3x16x16xf32> to vector<3x16x1xf32>
    %cst = arith.constant 4.000000e-01 : f32
    %60 = vector.broadcast %cst : f32 to vector<3x16x16xf32>
    %61 = arith.mulf %60, %57 : vector<3x16x16xf32>
    %c15_i32_22 = arith.constant 15 : i32
    %62 = tpu.dynamic_rotate %57 by %c15_i32_22 dim 2 : vector<3x16x16xf32>, i32 -> vector<3x16x16xf32>
    %63 = vector.shape_cast %40 : vector<16x16xi1> to vector<1x16x16xi1>
    %64 = vector.broadcast %63 : vector<1x16x16xi1> to vector<3x16x16xi1>
    %65 = vector.shape_cast %59 : vector<3x16x1xf32> to vector<3x16x1xf32>
    %66 = vector.broadcast %65 : vector<3x16x1xf32> to vector<3x16x16xf32>
    %67 = arith.select %64, %66, %62 : vector<3x16x16xi1>, vector<3x16x16xf32>
    %c1_i32_23 = arith.constant 1 : i32
    %68 = tpu.dynamic_rotate %57 by %c1_i32_23 dim 2 : vector<3x16x16xf32>, i32 -> vector<3x16x16xf32>
    %69 = vector.shape_cast %44 : vector<16x16xi1> to vector<1x16x16xi1>
    %70 = vector.broadcast %69 : vector<1x16x16xi1> to vector<3x16x16xi1>
    %71 = vector.shape_cast %58 : vector<3x16x1xf32> to vector<3x16x1xf32>
    %72 = vector.broadcast %71 : vector<3x16x1xf32> to vector<3x16x16xf32>
    %73 = arith.select %70, %72, %68 : vector<3x16x16xi1>, vector<3x16x16xf32>
    %cst_24 = arith.constant 2.500000e-01 : f32
    %74 = vector.broadcast %cst_24 : f32 to vector<3x16x16xf32>
    %75 = arith.mulf %74, %67 : vector<3x16x16xf32>
    %76 = arith.addf %61, %75 : vector<3x16x16xf32>
    %cst_25 = arith.constant 2.500000e-01 : f32
    %77 = vector.broadcast %cst_25 : f32 to vector<3x16x16xf32>
    %78 = arith.mulf %77, %73 : vector<3x16x16xf32>
    %79 = arith.addf %76, %78 : vector<3x16x16xf32>
    %c14_i32_26 = arith.constant 14 : i32
    %80 = tpu.dynamic_rotate %57 by %c14_i32_26 dim 2 : vector<3x16x16xf32>, i32 -> vector<3x16x16xf32>
    %81 = vector.shape_cast %42 : vector<16x16xi1> to vector<1x16x16xi1>
    %82 = vector.broadcast %81 : vector<1x16x16xi1> to vector<3x16x16xi1>
    %83 = vector.shape_cast %59 : vector<3x16x1xf32> to vector<3x16x1xf32>
    %84 = vector.broadcast %83 : vector<3x16x1xf32> to vector<3x16x16xf32>
    %85 = arith.select %82, %84, %80 : vector<3x16x16xi1>, vector<3x16x16xf32>
    %c2_i32_27 = arith.constant 2 : i32
    %86 = tpu.dynamic_rotate %57 by %c2_i32_27 dim 2 : vector<3x16x16xf32>, i32 -> vector<3x16x16xf32>
    %87 = vector.shape_cast %46 : vector<16x16xi1> to vector<1x16x16xi1>
    %88 = vector.broadcast %87 : vector<1x16x16xi1> to vector<3x16x16xi1>
    %89 = vector.shape_cast %58 : vector<3x16x1xf32> to vector<3x16x1xf32>
    %90 = vector.broadcast %89 : vector<3x16x1xf32> to vector<3x16x16xf32>
    %91 = arith.select %88, %90, %86 : vector<3x16x16xi1>, vector<3x16x16xf32>
    %cst_28 = arith.constant 5.000000e-02 : f32
    %92 = vector.broadcast %cst_28 : f32 to vector<3x16x16xf32>
    %93 = arith.mulf %92, %85 : vector<3x16x16xf32>
    %94 = arith.addf %79, %93 : vector<3x16x16xf32>
    %cst_29 = arith.constant 5.000000e-02 : f32
    %95 = vector.broadcast %cst_29 : f32 to vector<3x16x16xf32>
    %96 = arith.mulf %95, %91 : vector<3x16x16xf32>
    %97 = arith.addf %94, %96 : vector<3x16x16xf32>
    %98 = vector.extract_strided_slice %97 {offsets = [0, 0, 0], sizes = [3, 1, 16], strides = [1, 1, 1]} : vector<3x16x16xf32> to vector<3x1x16xf32>
    %99 = vector.extract_strided_slice %97 {offsets = [0, 15, 0], sizes = [3, 1, 16], strides = [1, 1, 1]} : vector<3x16x16xf32> to vector<3x1x16xf32>
    %cst_30 = arith.constant 4.000000e-01 : f32
    %100 = vector.broadcast %cst_30 : f32 to vector<3x16x16xf32>
    %101 = arith.mulf %100, %97 : vector<3x16x16xf32>
    %c15_i32_31 = arith.constant 15 : i32
    %102 = tpu.dynamic_rotate %97 by %c15_i32_31 dim 1 : vector<3x16x16xf32>, i32 -> vector<3x16x16xf32>
    %103 = vector.shape_cast %48 : vector<16x16xi1> to vector<1x16x16xi1>
    %104 = vector.broadcast %103 : vector<1x16x16xi1> to vector<3x16x16xi1>
    %105 = vector.shape_cast %99 : vector<3x1x16xf32> to vector<3x1x16xf32>
    %106 = vector.broadcast %105 : vector<3x1x16xf32> to vector<3x16x16xf32>
    %107 = arith.select %104, %106, %102 : vector<3x16x16xi1>, vector<3x16x16xf32>
    %c1_i32_32 = arith.constant 1 : i32
    %108 = tpu.dynamic_rotate %97 by %c1_i32_32 dim 1 : vector<3x16x16xf32>, i32 -> vector<3x16x16xf32>
    %109 = vector.shape_cast %52 : vector<16x16xi1> to vector<1x16x16xi1>
    %110 = vector.broadcast %109 : vector<1x16x16xi1> to vector<3x16x16xi1>
    %111 = vector.shape_cast %98 : vector<3x1x16xf32> to vector<3x1x16xf32>
    %112 = vector.broadcast %111 : vector<3x1x16xf32> to vector<3x16x16xf32>
    %113 = arith.select %110, %112, %108 : vector<3x16x16xi1>, vector<3x16x16xf32>
    %cst_33 = arith.constant 2.500000e-01 : f32
    %114 = vector.broadcast %cst_33 : f32 to vector<3x16x16xf32>
    %115 = arith.mulf %114, %107 : vector<3x16x16xf32>
    %116 = arith.addf %101, %115 : vector<3x16x16xf32>
    %cst_34 = arith.constant 2.500000e-01 : f32
    %117 = vector.broadcast %cst_34 : f32 to vector<3x16x16xf32>
    %118 = arith.mulf %117, %113 : vector<3x16x16xf32>
    %119 = arith.addf %116, %118 : vector<3x16x16xf32>
    %c14_i32_35 = arith.constant 14 : i32
    %120 = tpu.dynamic_rotate %97 by %c14_i32_35 dim 1 : vector<3x16x16xf32>, i32 -> vector<3x16x16xf32>
    %121 = vector.shape_cast %50 : vector<16x16xi1> to vector<1x16x16xi1>
    %122 = vector.broadcast %121 : vector<1x16x16xi1> to vector<3x16x16xi1>
    %123 = vector.shape_cast %99 : vector<3x1x16xf32> to vector<3x1x16xf32>
    %124 = vector.broadcast %123 : vector<3x1x16xf32> to vector<3x16x16xf32>
    %125 = arith.select %122, %124, %120 : vector<3x16x16xi1>, vector<3x16x16xf32>
    %c2_i32_36 = arith.constant 2 : i32
    %126 = tpu.dynamic_rotate %97 by %c2_i32_36 dim 1 : vector<3x16x16xf32>, i32 -> vector<3x16x16xf32>
    %127 = vector.shape_cast %54 : vector<16x16xi1> to vector<1x16x16xi1>
    %128 = vector.broadcast %127 : vector<1x16x16xi1> to vector<3x16x16xi1>
    %129 = vector.shape_cast %98 : vector<3x1x16xf32> to vector<3x1x16xf32>
    %130 = vector.broadcast %129 : vector<3x1x16xf32> to vector<3x16x16xf32>
    %131 = arith.select %128, %130, %126 : vector<3x16x16xi1>, vector<3x16x16xf32>
    %cst_37 = arith.constant 5.000000e-02 : f32
    %132 = vector.broadcast %cst_37 : f32 to vector<3x16x16xf32>
    %133 = arith.mulf %132, %125 : vector<3x16x16xf32>
    %134 = arith.addf %119, %133 : vector<3x16x16xf32>
    %cst_38 = arith.constant 5.000000e-02 : f32
    %135 = vector.broadcast %cst_38 : f32 to vector<3x16x16xf32>
    %136 = arith.mulf %135, %131 : vector<3x16x16xf32>
    %137 = arith.addf %134, %136 : vector<3x16x16xf32>
    %cst_39 = arith.constant 0.000000e+00 : f32
    %138 = vector.shape_cast %38 : vector<16x16xi1> to vector<1x16x16xi1>
    %139 = vector.broadcast %138 : vector<1x16x16xi1> to vector<3x16x16xi1>
    %140 = vector.broadcast %cst_39 : f32 to vector<3x16x16xf32>
    %141 = arith.select %139, %137, %140 : vector<3x16x16xi1>, vector<3x16x16xf32>
    %142 = vector.extract_strided_slice %141 {offsets = [0, 0, 0], sizes = [3, 16, 1], strides = [1, 1, 1]} : vector<3x16x16xf32> to vector<3x16x1xf32>
    %143 = vector.extract_strided_slice %141 {offsets = [0, 0, 15], sizes = [3, 16, 1], strides = [1, 1, 1]} : vector<3x16x16xf32> to vector<3x16x1xf32>
    %cst_40 = arith.constant 8.000000e-01 : f32
    %144 = vector.broadcast %cst_40 : f32 to vector<3x16x16xf32>
    %145 = arith.mulf %144, %141 : vector<3x16x16xf32>
    %c15_i32_41 = arith.constant 15 : i32
    %146 = tpu.dynamic_rotate %141 by %c15_i32_41 dim 2 : vector<3x16x16xf32>, i32 -> vector<3x16x16xf32>
    %147 = vector.shape_cast %40 : vector<16x16xi1> to vector<1x16x16xi1>
    %148 = vector.broadcast %147 : vector<1x16x16xi1> to vector<3x16x16xi1>
    %149 = vector.shape_cast %143 : vector<3x16x1xf32> to vector<3x16x1xf32>
    %150 = vector.broadcast %149 : vector<3x16x1xf32> to vector<3x16x16xf32>
    %151 = arith.select %148, %150, %146 : vector<3x16x16xi1>, vector<3x16x16xf32>
    %c1_i32_42 = arith.constant 1 : i32
    %152 = tpu.dynamic_rotate %141 by %c1_i32_42 dim 2 : vector<3x16x16xf32>, i32 -> vector<3x16x16xf32>
    %153 = vector.shape_cast %44 : vector<16x16xi1> to vector<1x16x16xi1>
    %154 = vector.broadcast %153 : vector<1x16x16xi1> to vector<3x16x16xi1>
    %155 = vector.shape_cast %142 : vector<3x16x1xf32> to vector<3x16x1xf32>
    %156 = vector.broadcast %155 : vector<3x16x1xf32> to vector<3x16x16xf32>
    %157 = arith.select %154, %156, %152 : vector<3x16x16xi1>, vector<3x16x16xf32>
    %cst_43 = arith.constant 5.000000e-01 : f32
    %158 = vector.broadcast %cst_43 : f32 to vector<3x16x16xf32>
    %159 = arith.mulf %158, %151 : vector<3x16x16xf32>
    %160 = arith.addf %145, %159 : vector<3x16x16xf32>
    %cst_44 = arith.constant 5.000000e-01 : f32
    %161 = vector.broadcast %cst_44 : f32 to vector<3x16x16xf32>
    %162 = arith.mulf %161, %157 : vector<3x16x16xf32>
    %163 = arith.addf %160, %162 : vector<3x16x16xf32>
    %c14_i32_45 = arith.constant 14 : i32
    %164 = tpu.dynamic_rotate %141 by %c14_i32_45 dim 2 : vector<3x16x16xf32>, i32 -> vector<3x16x16xf32>
    %165 = vector.shape_cast %42 : vector<16x16xi1> to vector<1x16x16xi1>
    %166 = vector.broadcast %165 : vector<1x16x16xi1> to vector<3x16x16xi1>
    %167 = vector.shape_cast %143 : vector<3x16x1xf32> to vector<3x16x1xf32>
    %168 = vector.broadcast %167 : vector<3x16x1xf32> to vector<3x16x16xf32>
    %169 = arith.select %166, %168, %164 : vector<3x16x16xi1>, vector<3x16x16xf32>
    %c2_i32_46 = arith.constant 2 : i32
    %170 = tpu.dynamic_rotate %141 by %c2_i32_46 dim 2 : vector<3x16x16xf32>, i32 -> vector<3x16x16xf32>
    %171 = vector.shape_cast %46 : vector<16x16xi1> to vector<1x16x16xi1>
    %172 = vector.broadcast %171 : vector<1x16x16xi1> to vector<3x16x16xi1>
    %173 = vector.shape_cast %142 : vector<3x16x1xf32> to vector<3x16x1xf32>
    %174 = vector.broadcast %173 : vector<3x16x1xf32> to vector<3x16x16xf32>
    %175 = arith.select %172, %174, %170 : vector<3x16x16xi1>, vector<3x16x16xf32>
    %cst_47 = arith.constant 1.000000e-01 : f32
    %176 = vector.broadcast %cst_47 : f32 to vector<3x16x16xf32>
    %177 = arith.mulf %176, %169 : vector<3x16x16xf32>
    %178 = arith.addf %163, %177 : vector<3x16x16xf32>
    %cst_48 = arith.constant 1.000000e-01 : f32
    %179 = vector.broadcast %cst_48 : f32 to vector<3x16x16xf32>
    %180 = arith.mulf %179, %175 : vector<3x16x16xf32>
    %181 = arith.addf %178, %180 : vector<3x16x16xf32>
    %182 = vector.extract_strided_slice %181 {offsets = [0, 0, 0], sizes = [3, 1, 16], strides = [1, 1, 1]} : vector<3x16x16xf32> to vector<3x1x16xf32>
    %183 = vector.extract_strided_slice %181 {offsets = [0, 15, 0], sizes = [3, 1, 16], strides = [1, 1, 1]} : vector<3x16x16xf32> to vector<3x1x16xf32>
    %cst_49 = arith.constant 8.000000e-01 : f32
    %184 = vector.broadcast %cst_49 : f32 to vector<3x16x16xf32>
    %185 = arith.mulf %184, %181 : vector<3x16x16xf32>
    %c15_i32_50 = arith.constant 15 : i32
    %186 = tpu.dynamic_rotate %181 by %c15_i32_50 dim 1 : vector<3x16x16xf32>, i32 -> vector<3x16x16xf32>
    %187 = vector.shape_cast %48 : vector<16x16xi1> to vector<1x16x16xi1>
    %188 = vector.broadcast %187 : vector<1x16x16xi1> to vector<3x16x16xi1>
    %189 = vector.shape_cast %183 : vector<3x1x16xf32> to vector<3x1x16xf32>
    %190 = vector.broadcast %189 : vector<3x1x16xf32> to vector<3x16x16xf32>
    %191 = arith.select %188, %190, %186 : vector<3x16x16xi1>, vector<3x16x16xf32>
    %c1_i32_51 = arith.constant 1 : i32
    %192 = tpu.dynamic_rotate %181 by %c1_i32_51 dim 1 : vector<3x16x16xf32>, i32 -> vector<3x16x16xf32>
    %193 = vector.shape_cast %52 : vector<16x16xi1> to vector<1x16x16xi1>
    %194 = vector.broadcast %193 : vector<1x16x16xi1> to vector<3x16x16xi1>
    %195 = vector.shape_cast %182 : vector<3x1x16xf32> to vector<3x1x16xf32>
    %196 = vector.broadcast %195 : vector<3x1x16xf32> to vector<3x16x16xf32>
    %197 = arith.select %194, %196, %192 : vector<3x16x16xi1>, vector<3x16x16xf32>
    %cst_52 = arith.constant 5.000000e-01 : f32
    %198 = vector.broadcast %cst_52 : f32 to vector<3x16x16xf32>
    %199 = arith.mulf %198, %191 : vector<3x16x16xf32>
    %200 = arith.addf %185, %199 : vector<3x16x16xf32>
    %cst_53 = arith.constant 5.000000e-01 : f32
    %201 = vector.broadcast %cst_53 : f32 to vector<3x16x16xf32>
    %202 = arith.mulf %201, %197 : vector<3x16x16xf32>
    %203 = arith.addf %200, %202 : vector<3x16x16xf32>
    %c14_i32_54 = arith.constant 14 : i32
    %204 = tpu.dynamic_rotate %181 by %c14_i32_54 dim 1 : vector<3x16x16xf32>, i32 -> vector<3x16x16xf32>
    %205 = vector.shape_cast %50 : vector<16x16xi1> to vector<1x16x16xi1>
    %206 = vector.broadcast %205 : vector<1x16x16xi1> to vector<3x16x16xi1>
    %207 = vector.shape_cast %183 : vector<3x1x16xf32> to vector<3x1x16xf32>
    %208 = vector.broadcast %207 : vector<3x1x16xf32> to vector<3x16x16xf32>
    %209 = arith.select %206, %208, %204 : vector<3x16x16xi1>, vector<3x16x16xf32>
    %c2_i32_55 = arith.constant 2 : i32
    %210 = tpu.dynamic_rotate %181 by %c2_i32_55 dim 1 : vector<3x16x16xf32>, i32 -> vector<3x16x16xf32>
    %211 = vector.shape_cast %54 : vector<16x16xi1> to vector<1x16x16xi1>
    %212 = vector.broadcast %211 : vector<1x16x16xi1> to vector<3x16x16xi1>
    %213 = vector.shape_cast %182 : vector<3x1x16xf32> to vector<3x1x16xf32>
    %214 = vector.broadcast %213 : vector<3x1x16xf32> to vector<3x16x16xf32>
    %215 = arith.select %212, %214, %210 : vector<3x16x16xi1>, vector<3x16x16xf32>
    %cst_56 = arith.constant 1.000000e-01 : f32
    %216 = vector.broadcast %cst_56 : f32 to vector<3x16x16xf32>
    %217 = arith.mulf %216, %209 : vector<3x16x16xf32>
    %218 = arith.addf %203, %217 : vector<3x16x16xf32>
    %cst_57 = arith.constant 1.000000e-01 : f32
    %219 = vector.broadcast %cst_57 : f32 to vector<3x16x16xf32>
    %220 = arith.mulf %219, %215 : vector<3x16x16xf32>
    %221 = arith.addf %218, %220 : vector<3x16x16xf32>
    %222 = arith.subf %57, %221 : vector<3x16x16xf32>
    %223 = arith.mulf %222, %222 : vector<3x16x16xf32>
    %cst_58 = arith.constant 9.99999997E-7 : f32
    %224 = vector.broadcast %cst_58 : f32 to vector<3x16x16xf32>
    %225 = arith.addf %223, %224 : vector<3x16x16xf32>
    %226 = math.sqrt %225 : vector<3x16x16xf32>
    %227 = vector.shape_cast %226 : vector<3x16x16xf32> to vector<1x3x16x16xf32>
    %cst_59 = arith.constant dense<0.000000e+00> : vector<1xf32>
    %228 = vector.multi_reduction <add>, %227, %cst_59 [1, 2, 3] : vector<1x3x16x16xf32> to vector<1xf32>
    %229 = vector.shape_cast %228 : vector<1xf32> to vector<1x1x1x1xf32>
    %230 = vector.extract %229[0, 0, 0, 0] : f32 from vector<1x1x1x1xf32>
    %231 = vector.broadcast %230 : f32 to vector<1x8x128xf32>
    %c0_60 = arith.constant 0 : index
    %c0_61 = arith.constant 0 : index
    %c0_62 = arith.constant 0 : index
    %232 = vector.load %arg3[%c0_60, %c0_61, %c0_62] : memref<1x8x128xf32, #tpu.memory_space<vmem>>, vector<1x8x128xf32>
    tpu.vector_store %arg3[%c0_60, %c0_61, %c0_62], %231 {strides = array<i32>} : memref<1x8x128xf32, #tpu.memory_space<vmem>>, vector<1x8x128xf32>,
    return
  }
  func.func @transform_0(%arg0: i32) -> (i32, i32, i32) {
    %c0_i32 = arith.constant 0 : i32
    %c0_i32_0 = arith.constant 0 : i32
    %c0_i32_1 = arith.constant 0 : i32
    return %arg0, %c0_i32, %c0_i32_0 : i32, i32, i32
  }
  func.func @transform_1(%arg0: i32) -> (i32, i32, i32) {
    %c0_i32 = arith.constant 0 : i32
    %c0_i32_0 = arith.constant 0 : i32
    %c0_i32_1 = arith.constant 0 : i32
    return %arg0, %c0_i32, %c0_i32_0 : i32, i32, i32
  }
  func.func @transform_2(%arg0: i32) -> (i32, i32, i32) {
    %c0_i32 = arith.constant 0 : i32
    %c0_i32_0 = arith.constant 0 : i32
    %c0_i32_1 = arith.constant 0 : i32
    return %arg0, %c0_i32, %c0_i32_0 : i32, i32, i32
  }
}

</mosaic_0001>

<llo_original>
// kernel: edge_loss.1
$region0: #{edge_loss.1}
  #allocation0 [shape = 'u32[]', space=smem, size = 0x4, offset = 0x4, fixed_abs, tag = 'smem constant byte address 0x4 - core index']
  #allocation1 [shape = 'u32[72,128]{1,0:T(1,128)}', space=vmem, size = 0x9000, scoped, tag = 'internal scratch']
  %s0 = inlined_call_operand.hbm [shape: f32[6,16,16], index: 0, kind: input, shape index: {}]
  %s1 = inlined_call_operand.hbm [shape: f32[6,16,16], index: 1, kind: input, shape index: {}]
  %s2 = inlined_call_operand.vmem [shape: f32[2,8,128], index: 2, kind: output, shape index: {}]
  %s3 = sld [smem:[#allocation0]]
  $region49: #{edge_loss.1} parent=0
    _
  %s5 = ssub.s32 1, %s3
  %s6 = scalar_select 0, %s5, %s3
  $region1: #{edge_loss.1} parent=0
    #allocation2 [shape = 'u8[49152]{0}', space=vmem, size = 0xc000, scoped, tag = 'input window, operand 0']
    #allocation3 [shape = 's32[2]{0}', space=sflag, size = 0x8, scoped, tag = 'scoped memory for edge_loss.1']
    #allocation4 [shape = 'u8[49152]{0}', space=vmem, size = 0xc000, scoped, tag = 'input window, operand 1']
    #allocation5 [shape = 's32[2]{0}', space=sflag, size = 0x8, scoped, tag = 'scoped memory for edge_loss.1']
    %7 = vsyncpa [#allocation3], 0
    %s8 = scalar_lea.sflag [#allocation3], 1
    %9 = vsyncpa %s8, 0
    %10 = vsyncpa [#allocation5], 0
    %s11 = scalar_lea.sflag [#allocation5], 1
    %12 = vsyncpa %s11, 0
    loop: start=0, step=1, limit=4
    $region2: #{edge_loss.1} parent=1 // loop_pre_header
      _
    $region3: #{edge_loss.1} parent=1 // loop_header
      %s14 = sphi 0, %s18
      %p15 = scmp.ge.s32.totalorder %s14, 4
      %s24 = sphi 0, %s26
      %s27 = sphi 0, %s24
      %s28 = sphi 0, %s27
      %s44 = sphi 0, %s28
      %s50 = sphi 0, %s52
      %s53 = sphi 0, %s50
      %s54 = sphi 0, %s53
      %s70 = sphi 0, %s54
      %s76 = sphi 0, %s78
      %s79 = sphi 0, %s76
      %s80 = sphi 0, %s79
      %s96 = sphi 0, %s80
    $region4: #{edge_loss.1} parent=1 // loop_header_branch
      %17 = sbr.rel (%p15) target = $region8
    $region5: #{edge_loss.1} parent=1 // loop_body
      %s19 = ssub.s32 %s14, 1
      %s20 = ssub.s32 %s14, 2
      %s21 = sadd.s32 %s14, 1
      %s22 = ssub.s32 %s14, %s21
      %p23 = scmp.eq.s32.totalorder %s22, 0
      %s25 = sadd.s32 %s24, 1
      %s26 = scalar_select %p23, %s24, %s25
      %p29 = pneg %p23
      %p30 = scmp.eq.s32.totalorder %s14, 1
      %p31 = por %p29, %p30
      %p32 = scmp.ne.s32.totalorder %s24, %s27
      %p33 = scmp.eq.s32.totalorder %s14, 0
      %p34 = por %p32, %p33
      %p35 = scmp.ne.s32.totalorder %s24, %s27
      %p36 = scmp.eq.s32.totalorder %s19, 1
      %p37 = por %p35, %p36
      %p38 = scmp.ne.s32.totalorder %s27, %s28
      %p39 = scmp.eq.s32.totalorder %s19, 0
      %p40 = por %p38, %p39
      %p41 = scmp.ne.s32.totalorder %s27, %s28
      %p42 = scmp.eq.s32.totalorder %s20, 1
      %p43 = por %p41, %p42
      %p45 = scmp.ne.s32.totalorder %s28, %s44
      %p46 = scmp.eq.s32.totalorder %s20, 0
      %p47 = por %p45, %p46
      %s48 = ssub.s32 %s14, %s21
      %p49 = scmp.eq.s32.totalorder %s48, 0
      %s51 = sadd.s32 %s50, 1
      %s52 = scalar_select %p49, %s50, %s51
      %p55 = pneg %p49
      %p56 = scmp.eq.s32.totalorder %s14, 1
      %p57 = por %p55, %p56
      %p58 = scmp.ne.s32.totalorder %s50, %s53
      %p59 = scmp.eq.s32.totalorder %s14, 0
      %p60 = por %p58, %p59
      %p61 = scmp.ne.s32.totalorder %s50, %s53
      %p62 = scmp.eq.s32.totalorder %s19, 1
      %p63 = por %p61, %p62
      %p64 = scmp.ne.s32.totalorder %s53, %s54
      %p65 = scmp.eq.s32.totalorder %s19, 0
      %p66 = por %p64, %p65
      %p67 = scmp.ne.s32.totalorder %s53, %s54
      %p68 = scmp.eq.s32.totalorder %s20, 1
      %p69 = por %p67, %p68
      %p71 = scmp.ne.s32.totalorder %s54, %s70
      %p72 = scmp.eq.s32.totalorder %s20, 0
      %p73 = por %p71, %p72
      %s74 = ssub.s32 %s14, %s21
      %p75 = scmp.eq.s32.totalorder %s74, 0
      %s77 = sadd.s32 %s76, 1
      %s78 = scalar_select %p75, %s76, %s77
      %p81 = pneg %p75
      %p82 = scmp.eq.s32.totalorder %s14, 1
      %p83 = por %p81, %p82
      %p84 = scmp.ne.s32.totalorder %s76, %s79
      %p85 = scmp.eq.s32.totalorder %s14, 0
      %p86 = por %p84, %p85
      %p87 = scmp.ne.s32.totalorder %s76, %s79
      %p88 = scmp.eq.s32.totalorder %s19, 1
      %p89 = por %p87, %p88
      %p90 = scmp.ne.s32.totalorder %s79, %s80
      %p91 = scmp.eq.s32.totalorder %s19, 0
      %p92 = por %p90, %p91
      %p93 = scmp.ne.s32.totalorder %s79, %s80
      %p94 = scmp.eq.s32.totalorder %s20, 1
      %p95 = por %p93, %p94
      %p97 = scmp.ne.s32.totalorder %s80, %s96
      %p98 = scmp.eq.s32.totalorder %s20, 0
      %p99 = por %p97, %p98
      %p100 = scmp.le.s32.totalorder 1, %s14
      %p101 = scmp.lt.s32.totalorder %s14, 3
      %p102 = pnand %p100, %p101
      %p103 = pneg %p102
      // Predicated region
      $region9: #{edge_loss.1} parent=5 // pred_check
        _
      $region10: #{edge_loss.1} parent=5 // pred_check_branch
        %105 = sbr.rel (%p102) target = $region12
      $region11: #{edge_loss.1} parent=5 // pred_region
        %s106 = ssub.s32 %s14, 1
      $region12: #{edge_loss.1} parent=5 // pred_fallthru
        _
      %p107 = scmp.lt.s32.totalorder %s14, 2
      // Predicated region
      $region13: #{edge_loss.1} parent=5 // pred_check
        %p108 = pneg %p107
      $region14: #{edge_loss.1} parent=5 // pred_check_branch
        %110 = sbr.rel (%p108) target = $region16
      $region15: #{edge_loss.1} parent=5 // pred_region
        // Predicated region
        $region17: #{edge_loss.1} parent=15 // pred_check
          %p111 = pneg %p34
        $region18: #{edge_loss.1} parent=15 // pred_check_branch
          %113 = sbr.rel (%p111) target = $region20
        $region19: #{edge_loss.1} parent=15 // pred_region
          %s114 = sand.u32 %s24, 1
          %s115 = scalar_lea.sflag [#allocation3], %s114
          %s116 = sand.u32 %s24, 1
          %s117 = smul.addr %s116, 48
          %s118 = scalar_lea.vmem [#allocation2], %s117
          %s119 = smul.u32 3, %s14
          %121 = vsyncadd %s115, 0
          %s122 = smul.addr %s119, 2
          %s123 = smul.addr %s122, 8
          %s124 = scalar_lea.hbm %s0, %s123
          %s125 = sshll.u32 %s124, 4
          %s126 = int_to_ptr.hbm [resolvable:$true] %s125
          %s127 = sshll.u32 %s118, 4
          %s128 = int_to_ptr.vmem [resolvable:$true] %s127
          %133 = dma.hbm_to_vmem [thread:$0]  %s126, 768, %s128, %s115, 128, 128, 8
        $region20: #{edge_loss.1} parent=15 // pred_fallthru
          _
        // Predicated region
        $region21: #{edge_loss.1} parent=15 // pred_check
          %p134 = pneg %p60
        $region22: #{edge_loss.1} parent=15 // pred_check_branch
          %136 = sbr.rel (%p134) target = $region24
        $region23: #{edge_loss.1} parent=15 // pred_region
          %s137 = sand.u32 %s50, 1
          %s138 = scalar_lea.sflag [#allocation5], %s137
          %s139 = sand.u32 %s50, 1
          %s140 = smul.addr %s139, 48
          %s141 = scalar_lea.vmem [#allocation4], %s140
          %s142 = smul.u32 3, %s14
          %144 = vsyncadd %s138, 0
          %s145 = smul.addr %s142, 2
          %s146 = smul.addr %s145, 8
          %s147 = scalar_lea.hbm %s1, %s146
          %s148 = sshll.u32 %s147, 4
          %s149 = int_to_ptr.hbm [resolvable:$true] %s148
          %s150 = sshll.u32 %s141, 4
          %s151 = int_to_ptr.vmem [resolvable:$true] %s150
          %156 = dma.hbm_to_vmem [thread:$0]  %s149, 768, %s151, %s138, 128, 128, 8
        $region24: #{edge_loss.1} parent=15 // pred_fallthru
          _
      $region16: #{edge_loss.1} parent=5 // pred_fallthru
        _
      %p157 = scmp.le.s32.totalorder 1, %s14
      %p158 = scmp.lt.s32.totalorder %s14, 3
      %p159 = pnand %p157, %p158
      %p160 = pneg %p159
      // Predicated region
      $region25: #{edge_loss.1} parent=5 // pred_check
        _
      $region26: #{edge_loss.1} parent=5 // pred_check_branch
        %162 = sbr.rel (%p159) target = $region28
      $region27: #{edge_loss.1} parent=5 // pred_region
        %s163 = ssub.s32 %s14, 1
        %s164 = sand.u32 %s27, 1
        %s165 = scalar_lea.sflag [#allocation3], %s164
        %s166 = sand.u32 %s27, 1
        %s167 = smul.addr %s166, 48
        %s168 = scalar_lea.vmem [#allocation2], %s167
        // Predicated region
        $region29: #{edge_loss.1} parent=27 // pred_check
          %p169 = pneg %p40
        $region30: #{edge_loss.1} parent=27 // pred_check_branch
          %171 = sbr.rel (%p169) target = $region32
        $region31: #{edge_loss.1} parent=27 // pred_region
          %173 = dma.done %s165, 768
        $region32: #{edge_loss.1} parent=27 // pred_fallthru
          _
        %s174 = sand.u32 %s53, 1
        %s175 = scalar_lea.sflag [#allocation5], %s174
        %s176 = sand.u32 %s53, 1
        %s177 = smul.addr %s176, 48
        %s178 = scalar_lea.vmem [#allocation4], %s177
        // Predicated region
        $region33: #{edge_loss.1} parent=27 // pred_check
          %p179 = pneg %p66
        $region34: #{edge_loss.1} parent=27 // pred_check_branch
          %181 = sbr.rel (%p179) target = $region36
        $region35: #{edge_loss.1} parent=27 // pred_region
          %183 = dma.done %s175, 768
        $region36: #{edge_loss.1} parent=27 // pred_fallthru
          _
        %s184 = sand.u32 %s27, 1
        %s185 = scalar_lea.sflag [#allocation3], %s184
        %s186 = sand.u32 %s27, 1
        %s187 = smul.addr %s186, 48
        %s188 = scalar_lea.vmem [#allocation2], %s187
        %p189 = pneg %p40
        %p190 = pneg %p37
        %s191 = sand.u32 %s53, 1
        %s192 = scalar_lea.sflag [#allocation5], %s191
        %s193 = sand.u32 %s53, 1
        %s194 = smul.addr %s193, 48
        %s195 = scalar_lea.vmem [#allocation4], %s194
        %p196 = pneg %p66
        %p197 = pneg %p63
        %p198 = pneg %p92
        %p199 = pneg %p89
        %p200 = scmp.lt.s32.totalorder %s19, 1
        %s201 = scalar_select %p200, %s19, 1
        %s202 = smul.addr %s201, 8
        %s203 = scalar_lea.vmem %s2, %s202
        %s204 = smul.u32 3, %s19
        %s205 = smul.u32 3, %s19
        %p206 = scmp.lt.s32.totalorder %s19, 1
        %s207 = scalar_select %p206, %s19, 1
        %s208 = smul.addr %s207, 8
        %s209 = scalar_lea.vmem %s2, %s208
        %v210 = vlaneseq
        %v211 = vshrl.u32 %v210, 7
        %v212 = vadd.s32 %v211, 8
        %v213 = vlaneseq
        %v214 = vand.u32 %v213, 127
        %vm215 = vcmp.lt.s32.totalorder %v211, 0
        %v216 = vsub.s32 0, %v211
        %v217 = vsel %vm215, %v216, %v211
        %v218 = vshrl.u32 %v217, 1
        %v219 = vand.u32 %v217, 1
        %v220 = vsub.s32 0, %v219
        %v221 = vsel %vm215, %v220, %v219
        %vm222 = vcmp.lt.s32.totalorder %v212, 0
        %v223 = vsub.s32 0, %v212
        %v224 = vsel %vm222, %v223, %v212
        %v225 = vshrl.u32 %v224, 1
        %v226 = vand.u32 %v224, 1
        %v227 = vsub.s32 0, %v226
        %v228 = vsel %vm222, %v227, %v226
        %vm229 = vcmp.ne.s32.totalorder %v221, 0
        %vm230 = vcmp.ne.s32.totalorder %v228, 0
        %vm231 = vcmp.lt.s32.totalorder %v221, 0
        %vm232 = vcmp.lt.s32.totalorder %v228, 0
        %vm233 = vmand %vm231, %vm229
        %vm234 = vmand %vm232, %vm230
        %v235 = vadd.s32 %v221, 2
        %v236 = vadd.s32 %v228, 2
        %v237 = vsel %vm233, %v235, %v221
        %v238 = vsel %vm234, %v236, %v228
        %vm239 = vcmp.eq.s32.totalorder %v237, 0
        %vm240 = vcmp.eq.s32.totalorder %v238, 0
        %vm241 = vcmp.lt.s32.totalorder %v214, 0
        %v242 = vsub.s32 0, %v214
        %v243 = vsel %vm241, %v242, %v214
        %v244 = vshrl.u32 %v243, 1
        %v245 = vand.u32 %v243, 1
        %v246 = vsub.s32 0, %v245
        %v247 = vsel %vm241, %v246, %v245
        %vm248 = vcmp.ne.s32.totalorder %v247, 0
        %vm249 = vcmp.lt.s32.totalorder %v247, 0
        %vm250 = vmand %vm249, %vm248
        %v251 = vadd.s32 %v247, 2
        %v252 = vsel %vm250, %v251, %v247
        %vm253 = vcmp.eq.s32.totalorder %v252, 0
        %vm254 = vmand %vm239, %vm253
        %vm255 = vmand %vm240, %vm253
        %vm256 = vcmp.ge.s32.totalorder %v214, 15
        %vm257 = vcmp.ge.s32.totalorder %v214, 14
        %vm258 = vcmp.lt.s32.totalorder %v214, 1
        %vm259 = vcmp.lt.s32.totalorder %v214, 2
        %vm260 = vcmp.ge.s32.totalorder %v211, 15
        %vm261 = vcmp.ge.s32.totalorder %v212, 15
        %vm262 = vcmp.ge.s32.totalorder %v211, 14
        %vm263 = vcmp.ge.s32.totalorder %v212, 14
        %vm264 = vcmp.lt.s32.totalorder %v211, 1
        %vm265 = vcmp.lt.s32.totalorder %v212, 1
        %vm266 = vcmp.lt.s32.totalorder %v211, 2
        %vm267 = vcmp.lt.s32.totalorder %v212, 2
        %v268 = vld [vmem:[%s168] sm:$0xff]
        %v269 = vld [vmem:[%s168 + $0x8] sm:$0xff]
        %v270 = vld [vmem:[%s168 + $0x10] sm:$0xff]
        %v271 = vld [vmem:[%s168 + $0x18] sm:$0xff]
        %v272 = vld [vmem:[%s168 + $0x20] sm:$0xff]
        %v273 = vld [vmem:[%s168 + $0x28] sm:$0xff]
        %v274 = vld [vmem:[%s178] sm:$0xff]
        %v275 = vld [vmem:[%s178 + $0x8] sm:$0xff]
        %v276 = vld [vmem:[%s178 + $0x10] sm:$0xff]
        %v277 = vld [vmem:[%s178 + $0x18] sm:$0xff]
        %v278 = vld [vmem:[%s178 + $0x20] sm:$0xff]
        %v279 = vld [vmem:[%s178 + $0x28] sm:$0xff]
        %v280 = vsub.f32 %v268, %v274
        %v281 = vsub.f32 %v269, %v275
        %v282 = vsub.f32 %v270, %v276
        %v283 = vsub.f32 %v271, %v277
        %v284 = vsub.f32 %v272, %v278
        %v285 = vsub.f32 %v273, %v279
        %v286 = vmul.f32 %v280, 0.4
        %v287 = vmul.f32 %v281, 0.4
        %v288 = vmul.f32 %v282, 0.4
        %v289 = vmul.f32 %v283, 0.4
        %v290 = vmul.f32 %v284, 0.4
        %v291 = vmul.f32 %v285, 0.4
        %vm292 = vcmask 1047680
        %293 = vrot.lane.b32.xlu0 %v280, 16
        %v294 = vpop.permute.xlu0 %293
        %v295 = vsel %vm292, %v294, %v280
        %296 = vrot.lane.b32.xlu0 %v281, 16
        %v297 = vpop.permute.xlu0 %296
        %v298 = vsel %vm292, %v297, %v281
        %299 = vrot.lane.b32.xlu0 %v282, 16
        %v300 = vpop.permute.xlu0 %299
        %v301 = vsel %vm292, %v300, %v282
        %302 = vrot.lane.b32.xlu0 %v283, 16
        %v303 = vpop.permute.xlu0 %302
        %v304 = vsel %vm292, %v303, %v283
        %305 = vrot.lane.b32.xlu0 %v284, 16
        %v306 = vpop.permute.xlu0 %305
        %v307 = vsel %vm292, %v306, %v284
        %308 = vrot.lane.b32.xlu0 %v285, 16
        %v309 = vpop.permute.xlu0 %308
        %v310 = vsel %vm292, %v309, %v285
        %311 = vrot.lane.b32.xlu0 %v295, 16
        %v312 = vpop.permute.xlu0 %311
        %313 = vrot.lane.b32.xlu0 %v298, 16
        %v314 = vpop.permute.xlu0 %313
        %315 = vrot.lane.b32.xlu0 %v301, 16
        %v316 = vpop.permute.xlu0 %315
        %317 = vrot.lane.b32.xlu0 %v304, 16
        %v318 = vpop.permute.xlu0 %317
        %319 = vrot.lane.b32.xlu0 %v307, 16
        %v320 = vpop.permute.xlu0 %319
        %321 = vrot.lane.b32.xlu0 %v310, 16
        %v322 = vpop.permute.xlu0 %321
        %v323 = vsel %vm292, %v312, %v280
        %v324 = vsel %vm292, %v314, %v281
        %v325 = vsel %vm292, %v316, %v282
        %v326 = vsel %vm292, %v318, %v283
        %v327 = vsel %vm292, %v320, %v284
        %v328 = vsel %vm292, %v322, %v285
        %v329 = vsel %vm256, 1, 0
        %vm330 = vcmp.eq.s32.totalorder %v329, 1
        %332 = vset.pattern.permute.xlu0 15
        %333 = vperm.xlu0 %332, %v280
        %v334 = vpop.permute.xlu0 %333
        %337 = vset.pattern.permute.xlu0 15
        %338 = vperm.xlu0 %337, %v281
        %v339 = vpop.permute.xlu0 %338
        %342 = vset.pattern.permute.xlu0 15
        %343 = vperm.xlu0 %342, %v282
        %v344 = vpop.permute.xlu0 %343
        %347 = vset.pattern.permute.xlu0 15
        %348 = vperm.xlu0 %347, %v283
        %v349 = vpop.permute.xlu0 %348
        %352 = vset.pattern.permute.xlu0 15
        %353 = vperm.xlu0 %352, %v284
        %v354 = vpop.permute.xlu0 %353
        %357 = vset.pattern.permute.xlu0 15
        %358 = vperm.xlu0 %357, %v285
        %v359 = vpop.permute.xlu0 %358
        %367 = vrot.lane.b32.xlu0 %v323, 127
        %v368 = vpop.permute.xlu0 %367
        %369 = vrot.lane.b32.xlu0 %v324, 127
        %v370 = vpop.permute.xlu0 %369
        %371 = vrot.lane.b32.xlu0 %v325, 127
        %v372 = vpop.permute.xlu0 %371
        %373 = vrot.lane.b32.xlu0 %v326, 127
        %v374 = vpop.permute.xlu0 %373
        %375 = vrot.lane.b32.xlu0 %v327, 127
        %v376 = vpop.permute.xlu0 %375
        %377 = vrot.lane.b32.xlu0 %v328, 127
        %v378 = vpop.permute.xlu0 %377
        %v385 = vsel %vm330, %v334, %v368
        %v386 = vsel %vm330, %v339, %v370
        %v387 = vsel %vm330, %v344, %v372
        %v388 = vsel %vm330, %v349, %v374
        %v389 = vsel %vm330, %v354, %v376
        %v390 = vsel %vm330, %v359, %v378
        %v391 = vsel %vm258, 1, 0
        %vm392 = vcmp.eq.s32.totalorder %v391, 1
        %393 = vset.pattern.permute.xlu0 0
        %394 = vperm.xlu0 %393, %v280
        %v395 = vpop.permute.xlu0 %394
        %397 = vset.pattern.permute.xlu0 0
        %398 = vperm.xlu0 %397, %v281
        %v399 = vpop.permute.xlu0 %398
        %401 = vset.pattern.permute.xlu0 0
        %402 = vperm.xlu0 %401, %v282
        %v403 = vpop.permute.xlu0 %402
        %405 = vset.pattern.permute.xlu0 0
        %406 = vperm.xlu0 %405, %v283
        %v407 = vpop.permute.xlu0 %406
        %409 = vset.pattern.permute.xlu0 0
        %410 = vperm.xlu0 %409, %v284
        %v411 = vpop.permute.xlu0 %410
        %413 = vset.pattern.permute.xlu0 0
        %414 = vperm.xlu0 %413, %v285
        %v415 = vpop.permute.xlu0 %414
        %417 = vrot.lane.b32.xlu0 %v323, 113
        %v418 = vpop.permute.xlu0 %417
        %419 = vrot.lane.b32.xlu0 %v324, 113
        %v420 = vpop.permute.xlu0 %419
        %421 = vrot.lane.b32.xlu0 %v325, 113
        %v422 = vpop.permute.xlu0 %421
        %423 = vrot.lane.b32.xlu0 %v326, 113
        %v424 = vpop.permute.xlu0 %423
        %425 = vrot.lane.b32.xlu0 %v327, 113
        %v426 = vpop.permute.xlu0 %425
        %427 = vrot.lane.b32.xlu0 %v328, 113
        %v428 = vpop.permute.xlu0 %427
        %v435 = vsel %vm392, %v395, %v418
        %v436 = vsel %vm392, %v399, %v420
        %v437 = vsel %vm392, %v403, %v422
        %v438 = vsel %vm392, %v407, %v424
        %v439 = vsel %vm392, %v411, %v426
        %v440 = vsel %vm392, %v415, %v428
        %v441 = vmul.f32 %v385, 0.25
        %v442 = vmul.f32 %v386, 0.25
        %v443 = vmul.f32 %v387, 0.25
        %v444 = vmul.f32 %v388, 0.25
        %v445 = vmul.f32 %v389, 0.25
        %v446 = vmul.f32 %v390, 0.25
        %v447 = vadd.f32 %v286, %v441
        %v448 = vadd.f32 %v287, %v442
        %v449 = vadd.f32 %v288, %v443
        %v450 = vadd.f32 %v289, %v444
        %v451 = vadd.f32 %v290, %v445
        %v452 = vadd.f32 %v291, %v446
        %v453 = vmul.f32 %v435, 0.25
        %v454 = vmul.f32 %v436, 0.25
        %v455 = vmul.f32 %v437, 0.25
        %v456 = vmul.f32 %v438, 0.25
        %v457 = vmul.f32 %v439, 0.25
        %v458 = vmul.f32 %v440, 0.25
        %v459 = vadd.f32 %v447, %v453
        %v460 = vadd.f32 %v448, %v454
        %v461 = vadd.f32 %v449, %v455
        %v462 = vadd.f32 %v450, %v456
        %v463 = vadd.f32 %v451, %v457
        %v464 = vadd.f32 %v452, %v458
        %v465 = vsel %vm257, 1, 0
        %vm466 = vcmp.eq.s32.totalorder %v465, 1
        %467 = vrot.lane.b32.xlu0 %v323, 126
        %v468 = vpop.permute.xlu0 %467
        %469 = vrot.lane.b32.xlu0 %v324, 126
        %v470 = vpop.permute.xlu0 %469
        %471 = vrot.lane.b32.xlu0 %v325, 126
        %v472 = vpop.permute.xlu0 %471
        %473 = vrot.lane.b32.xlu0 %v326, 126
        %v474 = vpop.permute.xlu0 %473
        %475 = vrot.lane.b32.xlu0 %v327, 126
        %v476 = vpop.permute.xlu0 %475
        %477 = vrot.lane.b32.xlu0 %v328, 126
        %v478 = vpop.permute.xlu0 %477
        %v485 = vsel %vm466, %v334, %v468
        %v486 = vsel %vm466, %v339, %v470
        %v487 = vsel %vm466, %v344, %v472
        %v488 = vsel %vm466, %v349, %v474
        %v489 = vsel %vm466, %v354, %v476
        %v490 = vsel %vm466, %v359, %v478
        %v491 = vsel %vm259, 1, 0
        %vm492 = vcmp.eq.s32.totalorder %v491, 1
        %493 = vrot.lane.b32.xlu0 %v323, 114
        %v494 = vpop.permute.xlu0 %493
        %495 = vrot.lane.b32.xlu0 %v324, 114
        %v496 = vpop.permute.xlu0 %495
        %497 = vrot.lane.b32.xlu0 %v325, 114
        %v498 = vpop.permute.xlu0 %497
        %499 = vrot.lane.b32.xlu0 %v326, 114
        %v500 = vpop.permute.xlu0 %499
        %501 = vrot.lane.b32.xlu0 %v327, 114
        %v502 = vpop.permute.xlu0 %501
        %503 = vrot.lane.b32.xlu0 %v328, 114
        %v504 = vpop.permute.xlu0 %503
        %v511 = vsel %vm492, %v395, %v494
        %v512 = vsel %vm492, %v399, %v496
        %v513 = vsel %vm492, %v403, %v498
        %v514 = vsel %vm492, %v407, %v500
        %v515 = vsel %vm492, %v411, %v502
        %v516 = vsel %vm492, %v415, %v504
        %v517 = vmul.f32 %v485, 0.05
        %v518 = vmul.f32 %v486, 0.05
        %v519 = vmul.f32 %v487, 0.05
        %v520 = vmul.f32 %v488, 0.05
        %v521 = vmul.f32 %v489, 0.05
        %v522 = vmul.f32 %v490, 0.05
        %v523 = vadd.f32 %v459, %v517
        %v524 = vadd.f32 %v460, %v518
        %v525 = vadd.f32 %v461, %v519
        %v526 = vadd.f32 %v462, %v520
        %v527 = vadd.f32 %v463, %v521
        %v528 = vadd.f32 %v464, %v522
        %v529 = vmul.f32 %v511, 0.05
        %v530 = vmul.f32 %v512, 0.05
        %v531 = vmul.f32 %v513, 0.05
        %v532 = vmul.f32 %v514, 0.05
        %v533 = vmul.f32 %v515, 0.05
        %v534 = vmul.f32 %v516, 0.05
        %v535 = vadd.f32 %v523, %v529
        %v536 = vadd.f32 %v524, %v530
        %v537 = vadd.f32 %v525, %v531
        %v538 = vadd.f32 %v526, %v532
        %v539 = vadd.f32 %v527, %v533
        %v540 = vadd.f32 %v528, %v534
        %v541 = vmul.f32 %v535, 0.4
        %v542 = vmul.f32 %v536, 0.4
        %v543 = vmul.f32 %v537, 0.4
        %v544 = vmul.f32 %v538, 0.4
        %v545 = vmul.f32 %v539, 0.4
        %v546 = vmul.f32 %v540, 0.4
        %v547 = vrot.slane %v535, 1
        %v548 = vrot.slane %v537, 1
        %v549 = vrot.slane %v539, 1
        %v550 = vrot.slane %v536, 1
        %v551 = vrot.slane %v538, 1
        %v552 = vrot.slane %v540, 1
        %vm553 = vcmp.lt.s32.totalorder %v211, 7
        %v554 = vsel %vm553, %v547, %v550
        %v555 = vsel %vm553, %v548, %v551
        %v556 = vsel %vm553, %v549, %v552
        %v557 = vsel %vm553, %v550, %v547
        %v558 = vsel %vm553, %v551, %v548
        %v559 = vsel %vm553, %v552, %v549
        %v560 = vsel %vm260, 1, 0
        %v561 = vsel %vm261, 1, 0
        %vm562 = vcmp.eq.s32.totalorder %v560, 1
        %vm563 = vcmp.eq.s32.totalorder %v561, 1
        %v564 = vperm.slane %v536, 7
        %v565 = vperm.slane %v538, 7
        %v566 = vperm.slane %v540, 7
        %v567 = vsel %vm562, %v564, %v554
        %v568 = vsel %vm563, %v564, %v557
        %v569 = vsel %vm562, %v565, %v555
        %v570 = vsel %vm563, %v565, %v558
        %v571 = vsel %vm562, %v566, %v556
        %v572 = vsel %vm563, %v566, %v559
        %v573 = vrot.slane %v535, 7
        %v574 = vrot.slane %v537, 7
        %v575 = vrot.slane %v539, 7
        %v576 = vrot.slane %v536, 7
        %v577 = vrot.slane %v538, 7
        %v578 = vrot.slane %v540, 7
        %v579 = vsel %vm264, %v573, %v576
        %v580 = vsel %vm264, %v574, %v577
        %v581 = vsel %vm264, %v575, %v578
        %v582 = vsel %vm264, %v576, %v573
        %v583 = vsel %vm264, %v577, %v574
        %v584 = vsel %vm264, %v578, %v575
        %v585 = vsel %vm264, 1, 0
        %v586 = vsel %vm265, 1, 0
        %vm587 = vcmp.eq.s32.totalorder %v585, 1
        %vm588 = vcmp.eq.s32.totalorder %v586, 1
        %v589 = vperm.slane %v535, 0
        %v590 = vperm.slane %v537, 0
        %v591 = vperm.slane %v539, 0
        %v592 = vsel %vm587, %v589, %v582
        %v593 = vsel %vm588, %v589, %v579
        %v594 = vsel %vm587, %v590, %v583
        %v595 = vsel %vm588, %v590, %v580
        %v596 = vsel %vm587, %v591, %v584
        %v597 = vsel %vm588, %v591, %v581
        %v598 = vmul.f32 %v567, 0.25
        %v599 = vmul.f32 %v568, 0.25
        %v600 = vmul.f32 %v569, 0.25
        %v601 = vmul.f32 %v570, 0.25
        %v602 = vmul.f32 %v571, 0.25
        %v603 = vmul.f32 %v572, 0.25
        %v604 = vadd.f32 %v541, %v598
        %v605 = vadd.f32 %v542, %v599
        %v606 = vadd.f32 %v543, %v600
        %v607 = vadd.f32 %v544, %v601
        %v608 = vadd.f32 %v545, %v602
        %v609 = vadd.f32 %v546, %v603
        %v610 = vmul.f32 %v592, 0.25
        %v611 = vmul.f32 %v593, 0.25
        %v612 = vmul.f32 %v594, 0.25
        %v613 = vmul.f32 %v595, 0.25
        %v614 = vmul.f32 %v596, 0.25
        %v615 = vmul.f32 %v597, 0.25
        %v616 = vadd.f32 %v604, %v610
        %v617 = vadd.f32 %v605, %v611
        %v618 = vadd.f32 %v606, %v612
        %v619 = vadd.f32 %v607, %v613
        %v620 = vadd.f32 %v608, %v614
        %v621 = vadd.f32 %v609, %v615
        %v622 = vrot.slane %v535, 2
        %v623 = vrot.slane %v537, 2
        %v624 = vrot.slane %v539, 2
        %v625 = vrot.slane %v536, 2
        %v626 = vrot.slane %v538, 2
        %v627 = vrot.slane %v540, 2
        %vm628 = vcmp.lt.s32.totalorder %v211, 6
        %v629 = vsel %vm628, %v622, %v625
        %v630 = vsel %vm628, %v623, %v626
        %v631 = vsel %vm628, %v624, %v627
        %v632 = vsel %vm628, %v625, %v622
        %v633 = vsel %vm628, %v626, %v623
        %v634 = vsel %vm628, %v627, %v624
        %v635 = vsel %vm262, 1, 0
        %v636 = vsel %vm263, 1, 0
        %vm637 = vcmp.eq.s32.totalorder %v635, 1
        %vm638 = vcmp.eq.s32.totalorder %v636, 1
        %v639 = vsel %vm637, %v564, %v629
        %v640 = vsel %vm638, %v564, %v632
        %v641 = vsel %vm637, %v565, %v630
        %v642 = vsel %vm638, %v565, %v633
        %v643 = vsel %vm637, %v566, %v631
        %v644 = vsel %vm638, %v566, %v634
        %v645 = vrot.slane %v535, 6
        %v646 = vrot.slane %v537, 6
        %v647 = vrot.slane %v539, 6
        %v648 = vrot.slane %v536, 6
        %v649 = vrot.slane %v538, 6
        %v650 = vrot.slane %v540, 6
        %v651 = vsel %vm266, %v645, %v648
        %v652 = vsel %vm266, %v646, %v649
        %v653 = vsel %vm266, %v647, %v650
        %v654 = vsel %vm266, %v648, %v645
        %v655 = vsel %vm266, %v649, %v646
        %v656 = vsel %vm266, %v650, %v647
        %v657 = vsel %vm266, 1, 0
        %v658 = vsel %vm267, 1, 0
        %vm659 = vcmp.eq.s32.totalorder %v657, 1
        %vm660 = vcmp.eq.s32.totalorder %v658, 1
        %v661 = vsel %vm659, %v589, %v654
        %v662 = vsel %vm660, %v589, %v651
        %v663 = vsel %vm659, %v590, %v655
        %v664 = vsel %vm660, %v590, %v652
        %v665 = vsel %vm659, %v591, %v656
        %v666 = vsel %vm660, %v591, %v653
        %v667 = vmul.f32 %v639, 0.05
        %v668 = vmul.f32 %v640, 0.05
        %v669 = vmul.f32 %v641, 0.05
        %v670 = vmul.f32 %v642, 0.05
        %v671 = vmul.f32 %v643, 0.05
        %v672 = vmul.f32 %v644, 0.05
        %v673 = vadd.f32 %v616, %v667
        %v674 = vadd.f32 %v617, %v668
        %v675 = vadd.f32 %v618, %v669
        %v676 = vadd.f32 %v619, %v670
        %v677 = vadd.f32 %v620, %v671
        %v678 = vadd.f32 %v621, %v672
        %v679 = vmul.f32 %v661, 0.05
        %v680 = vmul.f32 %v662, 0.05
        %v681 = vmul.f32 %v663, 0.05
        %v682 = vmul.f32 %v664, 0.05
        %v683 = vmul.f32 %v665, 0.05
        %v684 = vmul.f32 %v666, 0.05
        %v685 = vadd.f32 %v673, %v679
        %v686 = vadd.f32 %v674, %v680
        %v687 = vadd.f32 %v675, %v681
        %v688 = vadd.f32 %v676, %v682
        %v689 = vadd.f32 %v677, %v683
        %v690 = vadd.f32 %v678, %v684
        %v691 = vsel %vm254, 1, 0
        %v692 = vsel %vm255, 1, 0
        %vm693 = vcmp.eq.s32.totalorder %v691, 1
        %vm694 = vcmp.eq.s32.totalorder %v692, 1
        %v695 = vsel %vm693, %v685, 0.0
        %v696 = vsel %vm694, %v686, 0.0
        %v697 = vsel %vm693, %v687, 0.0
        %v698 = vsel %vm694, %v688, 0.0
        %v699 = vsel %vm693, %v689, 0.0
        %v700 = vsel %vm694, %v690, 0.0
        %v701 = vmul.f32 %v695, 0.8
        %v702 = vmul.f32 %v696, 0.8
        %v703 = vmul.f32 %v697, 0.8
        %v704 = vmul.f32 %v698, 0.8
        %v705 = vmul.f32 %v699, 0.8
        %v706 = vmul.f32 %v700, 0.8
        %707 = vrot.lane.b32.xlu0 %v695, 16
        %v708 = vpop.permute.xlu0 %707
        %v709 = vsel %vm292, %v708, %v695
        %710 = vrot.lane.b32.xlu0 %v696, 16
        %v711 = vpop.permute.xlu0 %710
        %v712 = vsel %vm292, %v711, %v696
        %713 = vrot.lane.b32.xlu0 %v697, 16
        %v714 = vpop.permute.xlu0 %713
        %v715 = vsel %vm292, %v714, %v697
        %716 = vrot.lane.b32.xlu0 %v698, 16
        %v717 = vpop.permute.xlu0 %716
        %v718 = vsel %vm292, %v717, %v698
        %719 = vrot.lane.b32.xlu0 %v699, 16
        %v720 = vpop.permute.xlu0 %719
        %v721 = vsel %vm292, %v720, %v699
        %722 = vrot.lane.b32.xlu0 %v700, 16
        %v723 = vpop.permute.xlu0 %722
        %v724 = vsel %vm292, %v723, %v700
        %725 = vrot.lane.b32.xlu0 %v709, 16
        %v726 = vpop.permute.xlu0 %725
        %727 = vrot.lane.b32.xlu0 %v712, 16
        %v728 = vpop.permute.xlu0 %727
        %729 = vrot.lane.b32.xlu0 %v715, 16
        %v730 = vpop.permute.xlu0 %729
        %731 = vrot.lane.b32.xlu0 %v718, 16
        %v732 = vpop.permute.xlu0 %731
        %733 = vrot.lane.b32.xlu0 %v721, 16
        %v734 = vpop.permute.xlu0 %733
        %735 = vrot.lane.b32.xlu0 %v724, 16
        %v736 = vpop.permute.xlu0 %735
        %v737 = vsel %vm292, %v726, %v695
        %v738 = vsel %vm292, %v728, %v696
        %v739 = vsel %vm292, %v730, %v697
        %v740 = vsel %vm292, %v732, %v698
        %v741 = vsel %vm292, %v734, %v699
        %v742 = vsel %vm292, %v736, %v700
        %744 = vset.pattern.permute.xlu0 15
        %745 = vperm.xlu0 %744, %v695
        %v746 = vpop.permute.xlu0 %745
        %749 = vset.pattern.permute.xlu0 15
        %750 = vperm.xlu0 %749, %v696
        %v751 = vpop.permute.xlu0 %750
        %754 = vset.pattern.permute.xlu0 15
        %755 = vperm.xlu0 %754, %v697
        %v756 = vpop.permute.xlu0 %755
        %759 = vset.pattern.permute.xlu0 15
        %760 = vperm.xlu0 %759, %v698
        %v761 = vpop.permute.xlu0 %760
        %764 = vset.pattern.permute.xlu0 15
        %765 = vperm.xlu0 %764, %v699
        %v766 = vpop.permute.xlu0 %765
        %769 = vset.pattern.permute.xlu0 15
        %770 = vperm.xlu0 %769, %v700
        %v771 = vpop.permute.xlu0 %770
        %779 = vrot.lane.b32.xlu0 %v737, 127
        %v780 = vpop.permute.xlu0 %779
        %781 = vrot.lane.b32.xlu0 %v738, 127
        %v782 = vpop.permute.xlu0 %781
        %783 = vrot.lane.b32.xlu0 %v739, 127
        %v784 = vpop.permute.xlu0 %783
        %785 = vrot.lane.b32.xlu0 %v740, 127
        %v786 = vpop.permute.xlu0 %785
        %787 = vrot.lane.b32.xlu0 %v741, 127
        %v788 = vpop.permute.xlu0 %787
        %789 = vrot.lane.b32.xlu0 %v742, 127
        %v790 = vpop.permute.xlu0 %789
        %v797 = vsel %vm330, %v746, %v780
        %v798 = vsel %vm330, %v751, %v782
        %v799 = vsel %vm330, %v756, %v784
        %v800 = vsel %vm330, %v761, %v786
        %v801 = vsel %vm330, %v766, %v788
        %v802 = vsel %vm330, %v771, %v790
        %803 = vset.pattern.permute.xlu0 0
        %804 = vperm.xlu0 %803, %v695
        %v805 = vpop.permute.xlu0 %804
        %807 = vset.pattern.permute.xlu0 0
        %808 = vperm.xlu0 %807, %v696
        %v809 = vpop.permute.xlu0 %808
        %811 = vset.pattern.permute.xlu0 0
        %812 = vperm.xlu0 %811, %v697
        %v813 = vpop.permute.xlu0 %812
        %815 = vset.pattern.permute.xlu0 0
        %816 = vperm.xlu0 %815, %v698
        %v817 = vpop.permute.xlu0 %816
        %819 = vset.pattern.permute.xlu0 0
        %820 = vperm.xlu0 %819, %v699
        %v821 = vpop.permute.xlu0 %820
        %823 = vset.pattern.permute.xlu0 0
        %824 = vperm.xlu0 %823, %v700
        %v825 = vpop.permute.xlu0 %824
        %827 = vrot.lane.b32.xlu0 %v737, 113
        %v828 = vpop.permute.xlu0 %827
        %829 = vrot.lane.b32.xlu0 %v738, 113
        %v830 = vpop.permute.xlu0 %829
        %831 = vrot.lane.b32.xlu0 %v739, 113
        %v832 = vpop.permute.xlu0 %831
        %833 = vrot.lane.b32.xlu0 %v740, 113
        %v834 = vpop.permute.xlu0 %833
        %835 = vrot.lane.b32.xlu0 %v741, 113
        %v836 = vpop.permute.xlu0 %835
        %837 = vrot.lane.b32.xlu0 %v742, 113
        %v838 = vpop.permute.xlu0 %837
        %v845 = vsel %vm392, %v805, %v828
        %v846 = vsel %vm392, %v809, %v830
        %v847 = vsel %vm392, %v813, %v832
        %v848 = vsel %vm392, %v817, %v834
        %v849 = vsel %vm392, %v821, %v836
        %v850 = vsel %vm392, %v825, %v838
        %v851 = vmul.f32 %v797, 0.5
        %v852 = vmul.f32 %v798, 0.5
        %v853 = vmul.f32 %v799, 0.5
        %v854 = vmul.f32 %v800, 0.5
        %v855 = vmul.f32 %v801, 0.5
        %v856 = vmul.f32 %v802, 0.5
        %v857 = vadd.f32 %v701, %v851
        %v858 = vadd.f32 %v702, %v852
        %v859 = vadd.f32 %v703, %v853
        %v860 = vadd.f32 %v704, %v854
        %v861 = vadd.f32 %v705, %v855
        %v862 = vadd.f32 %v706, %v856
        %v863 = vmul.f32 %v845, 0.5
        %v864 = vmul.f32 %v846, 0.5
        %v865 = vmul.f32 %v847, 0.5
        %v866 = vmul.f32 %v848, 0.5
        %v867 = vmul.f32 %v849, 0.5
        %v868 = vmul.f32 %v850, 0.5
        %v869 = vadd.f32 %v857, %v863
        %v870 = vadd.f32 %v858, %v864
        %v871 = vadd.f32 %v859, %v865
        %v872 = vadd.f32 %v860, %v866
        %v873 = vadd.f32 %v861, %v867
        %v874 = vadd.f32 %v862, %v868
        %875 = vrot.lane.b32.xlu0 %v737, 126
        %v876 = vpop.permute.xlu0 %875
        %877 = vrot.lane.b32.xlu0 %v738, 126
        %v878 = vpop.permute.xlu0 %877
        %879 = vrot.lane.b32.xlu0 %v739, 126
        %v880 = vpop.permute.xlu0 %879
        %881 = vrot.lane.b32.xlu0 %v740, 126
        %v882 = vpop.permute.xlu0 %881
        %883 = vrot.lane.b32.xlu0 %v741, 126
        %v884 = vpop.permute.xlu0 %883
        %885 = vrot.lane.b32.xlu0 %v742, 126
        %v886 = vpop.permute.xlu0 %885
        %v893 = vsel %vm466, %v746, %v876
        %v894 = vsel %vm466, %v751, %v878
        %v895 = vsel %vm466, %v756, %v880
        %v896 = vsel %vm466, %v761, %v882
        %v897 = vsel %vm466, %v766, %v884
        %v898 = vsel %vm466, %v771, %v886
        %899 = vrot.lane.b32.xlu0 %v737, 114
        %v900 = vpop.permute.xlu0 %899
        %901 = vrot.lane.b32.xlu0 %v738, 114
        %v902 = vpop.permute.xlu0 %901
        %903 = vrot.lane.b32.xlu0 %v739, 114
        %v904 = vpop.permute.xlu0 %903
        %905 = vrot.lane.b32.xlu0 %v740, 114
        %v906 = vpop.permute.xlu0 %905
        %907 = vrot.lane.b32.xlu0 %v741, 114
        %v908 = vpop.permute.xlu0 %907
        %909 = vrot.lane.b32.xlu0 %v742, 114
        %v910 = vpop.permute.xlu0 %909
        %v917 = vsel %vm492, %v805, %v900
        %v918 = vsel %vm492, %v809, %v902
        %v919 = vsel %vm492, %v813, %v904
        %v920 = vsel %vm492, %v817, %v906
        %v921 = vsel %vm492, %v821, %v908
        %v922 = vsel %vm492, %v825, %v910
        %v923 = vmul.f32 %v893, 0.1
        %v924 = vmul.f32 %v894, 0.1
        %v925 = vmul.f32 %v895, 0.1
        %v926 = vmul.f32 %v896, 0.1
        %v927 = vmul.f32 %v897, 0.1
        %v928 = vmul.f32 %v898, 0.1
        %v929 = vadd.f32 %v869, %v923
        %v930 = vadd.f32 %v870, %v924
        %v931 = vadd.f32 %v871, %v925
        %v932 = vadd.f32 %v872, %v926
        %v933 = vadd.f32 %v873, %v927
        %v934 = vadd.f32 %v874, %v928
        %v935 = vmul.f32 %v917, 0.1
        %v936 = vmul.f32 %v918, 0.1
        %v937 = vmul.f32 %v919, 0.1
        %v938 = vmul.f32 %v920, 0.1
        %v939 = vmul.f32 %v921, 0.1
        %v940 = vmul.f32 %v922, 0.1
        %v941 = vadd.f32 %v929, %v935
        %v942 = vadd.f32 %v930, %v936
        %v943 = vadd.f32 %v931, %v937
        %v944 = vadd.f32 %v932, %v938
        %v945 = vadd.f32 %v933, %v939
        %v946 = vadd.f32 %v934, %v940
        %v947 = vmul.f32 %v941, 0.8
        %v948 = vmul.f32 %v942, 0.8
        %v949 = vmul.f32 %v943, 0.8
        %v950 = vmul.f32 %v944, 0.8
        %v951 = vmul.f32 %v945, 0.8
        %v952 = vmul.f32 %v946, 0.8
        %v953 = vrot.slane %v941, 1
        %v954 = vrot.slane %v943, 1
        %v955 = vrot.slane %v945, 1
        %v956 = vrot.slane %v942, 1
        %v957 = vrot.slane %v944, 1
        %v958 = vrot.slane %v946, 1
        %v959 = vsel %vm553, %v953, %v956
        %v960 = vsel %vm553, %v954, %v957
        %v961 = vsel %vm553, %v955, %v958
        %v962 = vsel %vm553, %v956, %v953
        %v963 = vsel %vm553, %v957, %v954
        %v964 = vsel %vm553, %v958, %v955
        %v965 = vperm.slane %v942, 7
        %v966 = vperm.slane %v944, 7
        %v967 = vperm.slane %v946, 7
        %v968 = vsel %vm562, %v965, %v959
        %v969 = vsel %vm563, %v965, %v962
        %v970 = vsel %vm562, %v966, %v960
        %v971 = vsel %vm563, %v966, %v963
        %v972 = vsel %vm562, %v967, %v961
        %v973 = vsel %vm563, %v967, %v964
        %v974 = vrot.slane %v941, 7
        %v975 = vrot.slane %v943, 7
        %v976 = vrot.slane %v945, 7
        %v977 = vrot.slane %v942, 7
        %v978 = vrot.slane %v944, 7
        %v979 = vrot.slane %v946, 7
        %v980 = vsel %vm264, %v974, %v977
        %v981 = vsel %vm264, %v975, %v978
        %v982 = vsel %vm264, %v976, %v979
        %v983 = vsel %vm264, %v977, %v974
        %v984 = vsel %vm264, %v978, %v975
        %v985 = vsel %vm264, %v979, %v976
        %v986 = vperm.slane %v941, 0
        %v987 = vperm.slane %v943, 0
        %v988 = vperm.slane %v945, 0
        %v989 = vsel %vm587, %v986, %v983
        %v990 = vsel %vm588, %v986, %v980
        %v991 = vsel %vm587, %v987, %v984
        %v992 = vsel %vm588, %v987, %v981
        %v993 = vsel %vm587, %v988, %v985
        %v994 = vsel %vm588, %v988, %v982
        %v995 = vmul.f32 %v968, 0.5
        %v996 = vmul.f32 %v969, 0.5
        %v997 = vmul.f32 %v970, 0.5
        %v998 = vmul.f32 %v971, 0.5
        %v999 = vmul.f32 %v972, 0.5
        %v1000 = vmul.f32 %v973, 0.5
        %v1001 = vadd.f32 %v947, %v995
        %v1002 = vadd.f32 %v948, %v996
        %v1003 = vadd.f32 %v949, %v997
        %v1004 = vadd.f32 %v950, %v998
        %v1005 = vadd.f32 %v951, %v999
        %v1006 = vadd.f32 %v952, %v1000
        %v1007 = vmul.f32 %v989, 0.5
        %v1008 = vmul.f32 %v990, 0.5
        %v1009 = vmul.f32 %v991, 0.5
        %v1010 = vmul.f32 %v992, 0.5
        %v1011 = vmul.f32 %v993, 0.5
        %v1012 = vmul.f32 %v994, 0.5
        %v1013 = vadd.f32 %v1001, %v1007
        %v1014 = vadd.f32 %v1002, %v1008
        %v1015 = vadd.f32 %v1003, %v1009
        %v1016 = vadd.f32 %v1004, %v1010
        %v1017 = vadd.f32 %v1005, %v1011
        %v1018 = vadd.f32 %v1006, %v1012
        %v1019 = vrot.slane %v941, 2
        %v1020 = vrot.slane %v943, 2
        %v1021 = vrot.slane %v945, 2
        %v1022 = vrot.slane %v942, 2
        %v1023 = vrot.slane %v944, 2
        %v1024 = vrot.slane %v946, 2
        %v1025 = vsel %vm628, %v1019, %v1022
        %v1026 = vsel %vm628, %v1020, %v1023
        %v1027 = vsel %vm628, %v1021, %v1024
        %v1028 = vsel %vm628, %v1022, %v1019
        %v1029 = vsel %vm628, %v1023, %v1020
        %v1030 = vsel %vm628, %v1024, %v1021
        %v1031 = vsel %vm637, %v965, %v1025
        %v1032 = vsel %vm638, %v965, %v1028
        %v1033 = vsel %vm637, %v966, %v1026
        %v1034 = vsel %vm638, %v966, %v1029
        %v1035 = vsel %vm637, %v967, %v1027
        %v1036 = vsel %vm638, %v967, %v1030
        %v1037 = vrot.slane %v941, 6
        %v1038 = vrot.slane %v943, 6
        %v1039 = vrot.slane %v945, 6
        %v1040 = vrot.slane %v942, 6
        %v1041 = vrot.slane %v944, 6
        %v1042 = vrot.slane %v946, 6
        %v1043 = vsel %vm266, %v1037, %v1040
        %v1044 = vsel %vm266, %v1038, %v1041
        %v1045 = vsel %vm266, %v1039, %v1042
        %v1046 = vsel %vm266, %v1040, %v1037
        %v1047 = vsel %vm266, %v1041, %v1038
        %v1048 = vsel %vm266, %v1042, %v1039
        %v1049 = vsel %vm659, %v986, %v1046
        %v1050 = vsel %vm660, %v986, %v1043
        %v1051 = vsel %vm659, %v987, %v1047
        %v1052 = vsel %vm660, %v987, %v1044
        %v1053 = vsel %vm659, %v988, %v1048
        %v1054 = vsel %vm660, %v988, %v1045
        %v1055 = vmul.f32 %v1031, 0.1
        %v1056 = vmul.f32 %v1032, 0.1
        %v1057 = vmul.f32 %v1033, 0.1
        %v1058 = vmul.f32 %v1034, 0.1
        %v1059 = vmul.f32 %v1035, 0.1
        %v1060 = vmul.f32 %v1036, 0.1
        %v1061 = vadd.f32 %v1013, %v1055
        %v1062 = vadd.f32 %v1014, %v1056
        %v1063 = vadd.f32 %v1015, %v1057
        %v1064 = vadd.f32 %v1016, %v1058
        %v1065 = vadd.f32 %v1017, %v1059
        %v1066 = vadd.f32 %v1018, %v1060
        %v1067 = vmul.f32 %v1049, 0.1
        %v1068 = vmul.f32 %v1050, 0.1
        %v1069 = vmul.f32 %v1051, 0.1
        %v1070 = vmul.f32 %v1052, 0.1
        %v1071 = vmul.f32 %v1053, 0.1
        %v1072 = vmul.f32 %v1054, 0.1
        %v1073 = vadd.f32 %v1061, %v1067
        %v1074 = vadd.f32 %v1062, %v1068
        %v1075 = vadd.f32 %v1063, %v1069
        %v1076 = vadd.f32 %v1064, %v1070
        %v1077 = vadd.f32 %v1065, %v1071
        %v1078 = vadd.f32 %v1066, %v1072
        %v1079 = vsub.f32 %v280, %v1073
        %v1080 = vsub.f32 %v281, %v1074
        %v1081 = vsub.f32 %v282, %v1075
        %v1082 = vsub.f32 %v283, %v1076
        %v1083 = vsub.f32 %v284, %v1077
        %v1084 = vsub.f32 %v285, %v1078
        %v1085 = vmul.f32 %v1079, %v1079
        %v1086 = vmul.f32 %v1080, %v1080
        %v1087 = vmul.f32 %v1081, %v1081
        %v1088 = vmul.f32 %v1082, %v1082
        %v1089 = vmul.f32 %v1083, %v1083
        %v1090 = vmul.f32 %v1084, %v1084
        %v1091 = vadd.f32 %v1085, 1e-06
        %v1092 = vadd.f32 %v1086, 1e-06
        %v1093 = vadd.f32 %v1087, 1e-06
        %v1094 = vadd.f32 %v1088, 1e-06
        %v1095 = vadd.f32 %v1089, 1e-06
        %v1096 = vadd.f32 %v1090, 1e-06
        %v1097 = vrsqrt.pop %v1091
        %v1098 = vmul.f32 %v1097, %v1091
        %v1099 = vmul.f32 %v1098, %v1097
        %v1100 = vmul.f32 0.5, %v1099
        %v1101 = vsub.f32 1.5, %v1100
        %v1102 = vmul.f32 %v1097, %v1101
        %v1103 = vmul.f32 %v1091, %v1102
        %vm1104 = vcmp.eq.f32.partialorder %v1091, inf
        %v1105 = vsel %vm1104, %v1091, %v1103
        %vm1106 = vcmp.eq.f32.partialorder %v1091, 0.0
        %v1107 = vand.u32 %v1091, 2147483648
        %v1108 = vsel %vm1106, %v1107, %v1105
        %v1109 = vrsqrt.pop %v1092
        %v1110 = vmul.f32 %v1109, %v1092
        %v1111 = vmul.f32 %v1110, %v1109
        %v1112 = vmul.f32 0.5, %v1111
        %v1113 = vsub.f32 1.5, %v1112
        %v1114 = vmul.f32 %v1109, %v1113
        %v1115 = vmul.f32 %v1092, %v1114
        %vm1116 = vcmp.eq.f32.partialorder %v1092, inf
        %v1117 = vsel %vm1116, %v1092, %v1115
        %vm1118 = vcmp.eq.f32.partialorder %v1092, 0.0
        %v1119 = vand.u32 %v1092, 2147483648
        %v1120 = vsel %vm1118, %v1119, %v1117
        %v1121 = vrsqrt.pop %v1093
        %v1122 = vmul.f32 %v1121, %v1093
        %v1123 = vmul.f32 %v1122, %v1121
        %v1124 = vmul.f32 0.5, %v1123
        %v1125 = vsub.f32 1.5, %v1124
        %v1126 = vmul.f32 %v1121, %v1125
        %v1127 = vmul.f32 %v1093, %v1126
        %vm1128 = vcmp.eq.f32.partialorder %v1093, inf
        %v1129 = vsel %vm1128, %v1093, %v1127
        %vm1130 = vcmp.eq.f32.partialorder %v1093, 0.0
        %v1131 = vand.u32 %v1093, 2147483648
        %v1132 = vsel %vm1130, %v1131, %v1129
        %v1133 = vrsqrt.pop %v1094
        %v1134 = vmul.f32 %v1133, %v1094
        %v1135 = vmul.f32 %v1134, %v1133
        %v1136 = vmul.f32 0.5, %v1135
        %v1137 = vsub.f32 1.5, %v1136
        %v1138 = vmul.f32 %v1133, %v1137
        %v1139 = vmul.f32 %v1094, %v1138
        %vm1140 = vcmp.eq.f32.partialorder %v1094, inf
        %v1141 = vsel %vm1140, %v1094, %v1139
        %vm1142 = vcmp.eq.f32.partialorder %v1094, 0.0
        %v1143 = vand.u32 %v1094, 2147483648
        %v1144 = vsel %vm1142, %v1143, %v1141
        %v1145 = vrsqrt.pop %v1095
        %v1146 = vmul.f32 %v1145, %v1095
        %v1147 = vmul.f32 %v1146, %v1145
        %v1148 = vmul.f32 0.5, %v1147
        %v1149 = vsub.f32 1.5, %v1148
        %v1150 = vmul.f32 %v1145, %v1149
        %v1151 = vmul.f32 %v1095, %v1150
        %vm1152 = vcmp.eq.f32.partialorder %v1095, inf
        %v1153 = vsel %vm1152, %v1095, %v1151
        %vm1154 = vcmp.eq.f32.partialorder %v1095, 0.0
        %v1155 = vand.u32 %v1095, 2147483648
        %v1156 = vsel %vm1154, %v1155, %v1153
        %v1157 = vrsqrt.pop %v1096
        %v1158 = vmul.f32 %v1157, %v1096
        %v1159 = vmul.f32 %v1158, %v1157
        %v1160 = vmul.f32 0.5, %v1159
        %v1161 = vsub.f32 1.5, %v1160
        %v1162 = vmul.f32 %v1157, %v1161
        %v1163 = vmul.f32 %v1096, %v1162
        %vm1164 = vcmp.eq.f32.partialorder %v1096, inf
        %v1165 = vsel %vm1164, %v1096, %v1163
        %vm1166 = vcmp.eq.f32.partialorder %v1096, 0.0
        %v1167 = vand.u32 %v1096, 2147483648
        %v1168 = vsel %vm1166, %v1167, %v1165
        %vm1169 = vcmask 130048
        %v1170 = vsel %vm1169, %v1108, 0.0
        %v1171 = vsel %vm1169, %v1120, 0.0
        %v1172 = vadd.f32 %v1170, %v1171
        %v1173 = vsel %vm1169, %v1132, 0.0
        %v1174 = vadd.f32 %v1172, %v1173
        %v1175 = vsel %vm1169, %v1144, 0.0
        %v1176 = vadd.f32 %v1174, %v1175
        %v1177 = vsel %vm1169, %v1156, 0.0
        %v1178 = vadd.f32 %v1176, %v1177
        %v1179 = vsel %vm1169, %v1168, 0.0
        %v1180 = vadd.f32 %v1178, %v1179
        %1181 = vadd.xlane.f32.xlu0 %v1180
        %v1182 = vpop.xlane.xlu0 %1181
        %v1183 = vrot.slane %v1182, 4
        %v1184 = vadd.f32 %v1182, %v1183
        %v1185 = vrot.slane %v1184, 2
        %v1186 = vadd.f32 %v1184, %v1185
        %v1187 = vrot.slane %v1186, 1
        %v1188 = vadd.f32 %v1186, %v1187
        %s1189 = vtos %v1188
        %v1190 = vstv %s1189
        %1191 = vst [vmem:[%s209] sm:$0xff] %v1190
        %p1192 = scmp.lt.s32.totalorder %s19, 1
        %s1193 = scalar_select %p1192, %s19, 1
        %s1194 = smul.addr %s1193, 8
        %s1195 = scalar_lea.vmem %s2, %s1194
        // Predicated region
        $region37: #{edge_loss.1} parent=27 // pred_check
          %p1196 = pneg %p89
        $region38: #{edge_loss.1} parent=27 // pred_check_branch
          %1198 = sbr.rel (%p1196) target = $region40
        $region39: #{edge_loss.1} parent=27 // pred_region
          _
        $region40: #{edge_loss.1} parent=27 // pred_fallthru
          _
      $region28: #{edge_loss.1} parent=5 // pred_fallthru
        _
      %p1199 = scmp.le.s32.totalorder 2, %s14
      // Predicated region
      $region41: #{edge_loss.1} parent=5 // pred_check
        %p1200 = pneg %p1199
      $region42: #{edge_loss.1} parent=5 // pred_check_branch
        %1202 = sbr.rel (%p1200) target = $region44
      $region43: #{edge_loss.1} parent=5 // pred_region
        %s1203 = ssub.s32 %s14, 2
        // Predicated region
        $region45: #{edge_loss.1} parent=43 // pred_check
          %p1204 = pneg %p95
        $region46: #{edge_loss.1} parent=43 // pred_check_branch
          %1206 = sbr.rel (%p1204) target = $region48
        $region47: #{edge_loss.1} parent=43 // pred_region
          %p1207 = scmp.lt.s32.totalorder %s20, 1
          %s1208 = scalar_select %p1207, %s20, 1
          %s1209 = smul.addr %s1208, 8
          %s1210 = scalar_lea.vmem %s2, %s1209
        $region48: #{edge_loss.1} parent=43 // pred_fallthru
          _
      $region44: #{edge_loss.1} parent=5 // pred_fallthru
        _
    $region6: #{edge_loss.1} parent=1 // loop_footer
      %s18 = sadd.s32 1, %s14
    $region7: #{edge_loss.1} parent=1 // loop_footer_branch
      %13 = sbr.rel target = $region3
    $region8: #{edge_loss.1} parent=1 // loop_exit
      _
    %1211 = vsyncpa [#allocation3], 1
    %s1212 = scalar_lea.sflag [#allocation3], 1
    %1213 = vsyncpa %s1212, 1
    %1214 = vsyncpa [#allocation5], 1
    %s1215 = scalar_lea.sflag [#allocation5], 1
    %1216 = vsyncpa %s1215, 1

</llo_original>
